<compile_context>
chip_gen: v7x
topology: tpu7x:2x2x1
jax: 0.10.0
libtpu: 0.0.40
codegen_flags: <defaults>
</compile_context>

<pallas_src>
import jax
import jax.numpy as jnp
from jax.experimental import pallas as pl
from jax.experimental.pallas import tpu as pltpu

INPUT_SIZE = 4
PARAM_SIZE = 28
MLP_SIZE = 16
LATENT_SIZE = 5
STATE_SIZE = 9
NUM_HIDDEN_LAYER = 2   # MLP: latent -> 16 -> 16 -> 28 (ReLU between hidden layers)

# ---- packed-input row layout (features on sublanes, batch on lanes) ----
_ROW_X8 = 0                      # rows 0:8  -> [Z | other | 1]^T  (ones row folds b1)
_ROW_INSULIN = 8                 # row  8
_ROW_S = 9                       # rows 9:18 -> S^T
_ROW_CARB = 18                   # row  18
_X_ROWS = 19

# ---- packed-weight row layout (single resident buffer, 8-row-aligned sub-blocks) ----
_W_COLS = 16
_R_W01 = 0                       # rows 0:24, cols 0:8 : [[(AB@w1)^T | b1]; [AB^T | 0]; 0]
_NZ_ROW = MLP_SIZE               # inside the fused matmul result: rows 0:16 -> h1 pre-act,
                                 # rows 16:21 -> new_Z, rows 21:24 -> zero padding
_R_W2 = 24                       # rows 24:40, cols 0:16 : w2^T
_R_W3 = 40                       # rows 40:68, cols 0:16 : w3^T
_R_B2 = 72                       # rows 72:88, col 0     : b2
_R_B3 = 88                       # rows 88:116, col 0    : b3
_W_ROWS = 120


def _recip(x):
    """EUP approximate reciprocal + one Newton-Raphson step (exact to f32 round-off)."""
    r = pl.reciprocal(x, approx=True)
    return r * (2.0 - x * r)


def _dtd_kernel(x_ref, w_ref, newz_ref, news_ref):
    # ---- lane-dense data rows (batch on lanes) ----
    x8 = x_ref[_ROW_X8:_ROW_X8 + 8, :]                    # (8, B)  [Z | other | 1]^T
    insulin = x_ref[_ROW_INSULIN:_ROW_INSULIN + 1, :]     # (1, B)
    Gp = x_ref[_ROW_S + 0:_ROW_S + 1, :]
    Gt = x_ref[_ROW_S + 1:_ROW_S + 2, :]
    Ip = x_ref[_ROW_S + 2:_ROW_S + 3, :]
    Il = x_ref[_ROW_S + 3:_ROW_S + 4, :]
    X = x_ref[_ROW_S + 4:_ROW_S + 5, :]
    XL = x_ref[_ROW_S + 5:_ROW_S + 6, :]
    Qsto1 = x_ref[_ROW_S + 6:_ROW_S + 7, :]
    Qsto2 = x_ref[_ROW_S + 7:_ROW_S + 8, :]
    Qgut = x_ref[_ROW_S + 8:_ROW_S + 9, :]
    carb = x_ref[_ROW_CARB:_ROW_CARB + 1, :]

    # ---- weights: static slices of one resident packed buffer ----
    w01 = w_ref[_R_W01:_R_W01 + 24, 0:8]                  # (24, 8) fused [h1 | new_Z] block
    w2t = w_ref[_R_W2:_R_W2 + MLP_SIZE, 0:MLP_SIZE]       # (16, 16) w2^T
    w3t = w_ref[_R_W3:_R_W3 + PARAM_SIZE, 0:MLP_SIZE]     # (28, 16) w3^T
    b2 = w_ref[_R_B2:_R_B2 + MLP_SIZE, 0:1]               # (16, 1)
    b3 = w_ref[_R_B3:_R_B3 + PARAM_SIZE, 0:1]             # (28, 1)

    # ---- latent update + first MLP layer in ONE matmul (b1 folded via the ones row) ----
    zh = jnp.dot(w01, x8, preferred_element_type=jnp.float32)          # (24, B)
    h = jnp.maximum(zh[0:MLP_SIZE, :], 0.0)                            # relu(w1 path + b1)
    new_z = zh[_NZ_ROW:_NZ_ROW + LATENT_SIZE, :]                       # (5, B)
    h = jnp.maximum(jnp.dot(w2t, h, preferred_element_type=jnp.float32) + b2, 0.0)
    K = jnp.abs(jnp.dot(w3t, h, preferred_element_type=jnp.float32) + b3)   # (28, B)

    # ---- parameter rows (torch col 7 "D" is overwritten by col 15; only 15 is used) ----
    def row(i):
        return K[i:i + 1, :]

    k1, k2 = row(0), row(1)
    m1, m2, m3, m4 = row(2), row(3), row(4), row(5)
    kgri = row(6)
    kmin, kmax, kabs = row(8), row(9), row(10)
    alpha, beta = row(11), row(12)
    b, c = row(13), row(14)
    D = row(15)
    BW, f = row(16), row(17)
    kp1, kp2, kp3, ki = row(18), row(19), row(20), row(21)
    Uii, Vm0, Vmx = row(22), row(23), row(24)
    Km0, r1, p2u = row(25), row(26), row(27)

    # ---- ODE right-hand sides: lane-dense (1, B) elementwise ----
    EGP = kp1 - kp2 * Gp - kp3 * XL
    Qsto = Qsto1 + Qsto2
    # NOTE: (kmax - kmin / 2.0) reproduces the torch operator precedence verbatim.
    kemptQ = kmin + (kmax - kmin / 2.0) * (
        jnp.tanh(alpha * (Qsto - b * D)) - jnp.tanh(beta * (Qsto - c * D)) + 2.0)
    Ra = f * kabs * Qgut * _recip(BW)
    Uid = (Vm0 + Vmx * X * r1) * Gt * _recip(Km0 + jnp.abs(Gt))

    DQsto1 = -kgri * Qsto1 + D * carb
    DQsto2 = -kemptQ * Qsto2 + kgri * Qsto1
    DQgut = -kabs * Qgut + kemptQ * Qsto2
    DIp = -(m2 + m4) * Ip + m1 * Il + insulin
    DIl = -(m1 + m3) * Il + m2 * Ip
    DXL = -ki * (XL - Ip)
    DX = -p2u * X + p2u * Ip
    DGp = EGP + Ra - Uii - k1 * Gp + k2 * Gt
    DGt = -Uid + k1 * Gp - k2 * Gt

    # ---- direct per-row stores (Gp_next == new_S row 0, sliced outside) ----
    newz_ref[...] = new_z
    news_ref[0:1, :] = Gp + DGp
    news_ref[1:2, :] = Gt + DGt
    news_ref[2:3, :] = Ip + DIp
    news_ref[3:4, :] = Il + DIl
    news_ref[4:5, :] = X + DX
    news_ref[5:6, :] = XL + DXL
    news_ref[6:7, :] = Qsto1 + DQsto1
    news_ref[7:8, :] = Qsto2 + DQsto2
    news_ref[8:9, :] = Qgut + DQgut


def pack_weights(params):
    """Pack all weights/biases into one (120, 16) f32 buffer.

    Call ONCE and reuse via `packed_weights=`; do not repack per step.  The latent
    update (A, B), the first MLP layer w1, and its bias b1 are pre-folded into a single
    (24, 8) block so the kernel's leading matmul yields both new_Z and pre-ReLU h1.
    """
    A = jnp.asarray(params["A"], jnp.float32)                     # (5, 5)
    Bm = jnp.asarray(params["B"], jnp.float32)                    # (2, 5)
    w1 = jnp.asarray(params["w1"], jnp.float32)                   # (5, 16)
    w2 = jnp.asarray(params["w2"], jnp.float32)                   # (16, 16)
    w3 = jnp.asarray(params["w3"], jnp.float32)                   # (16, 28)
    b1 = jnp.asarray(params["b1"], jnp.float32).reshape(MLP_SIZE, 1)
    b2 = jnp.asarray(params["b2"], jnp.float32).reshape(MLP_SIZE, 1)
    b3 = jnp.asarray(params["b3"], jnp.float32).reshape(PARAM_SIZE, 1)

    AB = jnp.concatenate([A, Bm], axis=0)                         # (7, 5): [Z|other]@AB == Z@A + other@B

    w01 = jnp.zeros((24, 8), jnp.float32)
    w01 = w01.at[0:MLP_SIZE, 0:7].set((AB @ w1).T)                # first MLP layer pre-folded
    w01 = w01.at[0:MLP_SIZE, 7:8].set(b1)                         # b1 folded against the ones row
    w01 = w01.at[_NZ_ROW:_NZ_ROW + LATENT_SIZE, 0:7].set(AB.T)    # new_Z weights (bias col = 0)

    buf = jnp.zeros((_W_ROWS, _W_COLS), jnp.float32)
    buf = buf.at[_R_W01:_R_W01 + 24, 0:8].set(w01)
    buf = buf.at[_R_W2:_R_W2 + MLP_SIZE, 0:MLP_SIZE].set(w2.T)
    buf = buf.at[_R_W3:_R_W3 + PARAM_SIZE, 0:MLP_SIZE].set(w3.T)
    buf = buf.at[_R_B2:_R_B2 + MLP_SIZE, 0:1].set(b2)
    buf = buf.at[_R_B3:_R_B3 + PARAM_SIZE, 0:1].set(b3)
    return buf


def pack_inputs(inputs, Z, S):
    """(B,4),(B,5),(B,9) -> one (19, B) lane-dense slab (batch on lanes, ones row for b1)."""
    B = inputs.shape[0]
    insulin = inputs[:, 0:1]
    carb = inputs[:, 1:2]
    other = inputs[:, 2:4]
    ones = jnp.ones((B, 1), jnp.float32)
    x = jnp.concatenate([Z, other, ones, insulin, S, carb], axis=1)   # (B, 19)
    return x.T.astype(jnp.float32)                                    # (19, B)


def _round_up(n, m):
    return ((n + m - 1) // m) * m


def dtd_sim_cell_packed(x_packed, packed_weights, *, tile_b=2048):
    """Run the kernel on an already-packed (19, B) slab.

    Returns (new_Z^T (5, B), new_S^T (9, B)).  Prefer this entry point when stepping the
    cell repeatedly (keep Z/S in the transposed layout between steps) so the per-step
    host-side pack/unpack transposes of `dtd_sim_cell` disappear.
    """
    B = x_packed.shape[1]
    tile_b = max(128, _round_up(min(tile_b, _round_up(B, 128)), 128))
    n_tiles = pl.cdiv(B, tile_b)
    b_pad = n_tiles * tile_b
    if b_pad != B:
        # Edge-replicate (not zero-pad) so padded lanes never hit x/0 in the reciprocals.
        x_packed = jnp.pad(x_packed, ((0, 0), (0, b_pad - B)), mode="edge")

    newz_t, news_t = pl.pallas_call(
        _dtd_kernel,
        out_shape=(jax.ShapeDtypeStruct((LATENT_SIZE, b_pad), jnp.float32),
                   jax.ShapeDtypeStruct((STATE_SIZE, b_pad), jnp.float32)),
        grid=(n_tiles,),
        in_specs=[
            pl.BlockSpec((_X_ROWS, tile_b), lambda i: (0, i)),     # data slab, tiled on batch
            pl.BlockSpec((_W_ROWS, _W_COLS), lambda i: (0, 0)),    # packed weights, resident
        ],
        out_specs=(
            pl.BlockSpec((LATENT_SIZE, tile_b), lambda i: (0, i)),
            pl.BlockSpec((STATE_SIZE, tile_b), lambda i: (0, i)),
        ),
        compiler_params=pltpu.CompilerParams(
            dimension_semantics=("parallel",)),
    )(x_packed, packed_weights)
    return newz_t[:, :B], news_t[:, :B]


def dtd_sim_cell(inputs, hidden, params=None, *, packed_weights=None, tile_b=2048):
    """Torch-interface wrapper.  inputs: (B,4); hidden = (Z (B,5), S (B,9)).

    Returns (Gp_next (B,1), (new_Z (B,5), new_S (B,9))) — same semantics as DTDSimCell.
    Pass `packed_weights=pack_weights(params)` (packed once) to keep weight packing out of
    the per-step path.
    """
    if packed_weights is None:
        packed_weights = pack_weights(params)
    Z, S = hidden
    x = pack_inputs(inputs, Z, S)
    newz_t, news_t = dtd_sim_cell_packed(x, packed_weights, tile_b=tile_b)
    new_Z = newz_t.T
    new_S = news_t.T
    gp_next = new_S[:, 0:1]                      # Gp + DGp == row 0 of new_S
    return gp_next, (new_Z, new_S)


def _reference(inputs, hidden, p):
    """Pure-JAX reference replicating the torch code (exact divides) for a sanity check."""
    Z, S = hidden
    insulin, carb, other = inputs[:, 0:1], inputs[:, 1:2], inputs[:, 2:]
    Gp, Gt = S[:, 0:1], S[:, 1:2]
    Ip, Il = S[:, 2:3], S[:, 3:4]
    X, XL = S[:, 4:5], S[:, 5:6]
    Qsto1, Qsto2, Qgut = S[:, 6:7], S[:, 7:8], S[:, 8:9]
    new_Z = Z @ p["A"] + other @ p["B"]
    h = jnp.maximum(new_Z @ p["w1"] + p["b1"], 0.0)
    h = jnp.maximum(h @ p["w2"] + p["b2"], 0.0)
    K = jnp.abs(h @ p["w3"] + p["b3"])
    cols = [K[:, i:i + 1] for i in range(PARAM_SIZE)]
    (k1, k2, m1, m2, m3, m4, kgri, _Dfirst, kmin, kmax, kabs, alpha, beta, b,
     c, D, BW, f, kp1, kp2, kp3, ki, Uii, Vm0, Vmx, Km0, r1, p2u) = cols
    EGP = kp1 - kp2 * Gp - kp3 * XL
    Qsto = Qsto1 + Qsto2
    kemptQ = kmin + (kmax - kmin / 2.0) * (
        jnp.tanh(alpha * (Qsto - b * D)) - jnp.tanh(beta * (Qsto - c * D)) + 2.0)
    Ra = f * kabs * Qgut / BW
    Uid = (Vm0 + Vmx * X * r1) * Gt / (Km0 + jnp.abs(Gt))
    DQsto1 = -kgri * Qsto1 + D * carb
    DQsto2 = -kemptQ * Qsto2 + kgri * Qsto1
    DQgut = -kabs * Qgut + kemptQ * Qsto2
    DIp = -(m2 + m4) * Ip + m1 * Il + insulin
    DIl = -(m1 + m3) * Il + m2 * Ip
    DXL = -ki * (XL - Ip)
    DX = -p2u * X + p2u * Ip
    DGp = EGP + Ra - Uii - k1 * Gp + k2 * Gt
    DGt = -Uid + k1 * Gp - k2 * Gt
    new_S = jnp.concatenate(
        [Gp + DGp, Gt + DGt, Ip + DIp, Il + DIl, X + DX, XL + DXL,
         Qsto1 + DQsto1, Qsto2 + DQsto2, Qgut + DQgut], axis=-1)
    return Gp + DGp, (new_Z, new_S)


if __name__ == "__main__":
    key = jax.random.PRNGKey(0)
    ks = jax.random.split(key, 11)
    batch = 200   # small; deliberately not a multiple of 128 to exercise edge padding

    # Shapes from DTDSimCell.__init__.  The torch module inits A, B to zeros; we use small
    # random values so the kernel path is actually exercised.
    params = {
        "A": 0.1 * jax.random.normal(ks[0], (LATENT_SIZE, LATENT_SIZE), jnp.float32),
        "B": 0.1 * jax.random.normal(ks[1], (INPUT_SIZE - 2, LATENT_SIZE), jnp.float32),
        "w1": 0.3 * jax.random.normal(ks[2], (LATENT_SIZE, MLP_SIZE), jnp.float32),
        "b1": 0.1 * jax.random.normal(ks[3], (1, MLP_SIZE), jnp.float32),
        "w2": 0.3 * jax.random.normal(ks[4], (MLP_SIZE, MLP_SIZE), jnp.float32),
        "b2": 0.1 * jax.random.normal(ks[5], (1, MLP_SIZE), jnp.float32),
        "w3": 0.3 * jax.random.normal(ks[6], (MLP_SIZE, PARAM_SIZE), jnp.float32),
        "b3": 0.1 * jax.random.normal(ks[7], (1, PARAM_SIZE), jnp.float32),
    }

    inputs = jax.random.normal(ks[8], (batch, INPUT_SIZE), jnp.float32)
    Z = jax.random.normal(ks[9], (batch, LATENT_SIZE), jnp.float32)
    S = jax.random.normal(ks[10], (batch, STATE_SIZE), jnp.float32)

    w_packed = pack_weights(params)   # packed once, reused for every step

    gp_next, (new_Z, new_S) = dtd_sim_cell(inputs, (Z, S), packed_weights=w_packed)
    jax.block_until_ready((gp_next, new_Z, new_S))

    gp_exp, (newz_exp, news_exp) = _reference(inputs, (Z, S), params)
    assert jnp.allclose(new_Z, newz_exp, atol=1e-3, rtol=1e-3)
    assert jnp.allclose(new_S, news_exp, atol=1e-3, rtol=1e-3)
    assert jnp.allclose(gp_next, gp_exp, atol=1e-3, rtol=1e-3)

    print("KERNEL_OK")
</pallas_src>

<mosaic_0001>
module attributes {stable_mosaic.version = 11 : i64} {
  func.func @_dtd_kernel(%arg0: i32, %arg1: memref<19x256xf32, #tpu.memory_space<vmem>>, %arg2: memref<120x16xf32, #tpu.memory_space<vmem>>, %arg3: memref<5x256xf32, #tpu.memory_space<vmem>>, %arg4: memref<9x256xf32, #tpu.memory_space<vmem>>) attributes {dimension_semantics = [#tpu.dimension_semantics<parallel>], iteration_bounds = array<i64: 1>, scalar_prefetch = 0 : i64, scratch_operands = 0 : i64, tpu.core_type = #tpu.core_type<tc>, window_params = [{transform_indices = @transform_0, window_bounds = array<i64: 19, 256>}, {pipeline_mode = #tpu.pipeline_mode<synchronous>, transform_indices = @transform_1, window_bounds = array<i64: 120, 16>}, {transform_indices = @transform_2, window_bounds = array<i64: 5, 256>}, {transform_indices = @transform_3, window_bounds = array<i64: 9, 256>}]} {
    %c0 = arith.constant 0 : index
    %c0_0 = arith.constant 0 : index
    %0 = vector.load %arg1[%c0, %c0_0] : memref<19x256xf32, #tpu.memory_space<vmem>>, vector<8x256xf32>
    %c8 = arith.constant 8 : index
    %c0_1 = arith.constant 0 : index
    %1 = vector.load %arg1[%c8, %c0_1] : memref<19x256xf32, #tpu.memory_space<vmem>>, vector<1x256xf32>
    %c9 = arith.constant 9 : index
    %c0_2 = arith.constant 0 : index
    %2 = vector.load %arg1[%c9, %c0_2] : memref<19x256xf32, #tpu.memory_space<vmem>>, vector<1x256xf32>
    %c10 = arith.constant 10 : index
    %c0_3 = arith.constant 0 : index
    %3 = vector.load %arg1[%c10, %c0_3] : memref<19x256xf32, #tpu.memory_space<vmem>>, vector<1x256xf32>
    %c11 = arith.constant 11 : index
    %c0_4 = arith.constant 0 : index
    %4 = vector.load %arg1[%c11, %c0_4] : memref<19x256xf32, #tpu.memory_space<vmem>>, vector<1x256xf32>
    %c12 = arith.constant 12 : index
    %c0_5 = arith.constant 0 : index
    %5 = vector.load %arg1[%c12, %c0_5] : memref<19x256xf32, #tpu.memory_space<vmem>>, vector<1x256xf32>
    %c13 = arith.constant 13 : index
    %c0_6 = arith.constant 0 : index
    %6 = vector.load %arg1[%c13, %c0_6] : memref<19x256xf32, #tpu.memory_space<vmem>>, vector<1x256xf32>
    %c14 = arith.constant 14 : index
    %c0_7 = arith.constant 0 : index
    %7 = vector.load %arg1[%c14, %c0_7] : memref<19x256xf32, #tpu.memory_space<vmem>>, vector<1x256xf32>
    %c15 = arith.constant 15 : index
    %c0_8 = arith.constant 0 : index
    %8 = vector.load %arg1[%c15, %c0_8] : memref<19x256xf32, #tpu.memory_space<vmem>>, vector<1x256xf32>
    %c16 = arith.constant 16 : index
    %c0_9 = arith.constant 0 : index
    %9 = vector.load %arg1[%c16, %c0_9] : memref<19x256xf32, #tpu.memory_space<vmem>>, vector<1x256xf32>
    %c17 = arith.constant 17 : index
    %c0_10 = arith.constant 0 : index
    %10 = vector.load %arg1[%c17, %c0_10] : memref<19x256xf32, #tpu.memory_space<vmem>>, vector<1x256xf32>
    %c18 = arith.constant 18 : index
    %c0_11 = arith.constant 0 : index
    %11 = vector.load %arg1[%c18, %c0_11] : memref<19x256xf32, #tpu.memory_space<vmem>>, vector<1x256xf32>
    %c0_12 = arith.constant 0 : index
    %c0_13 = arith.constant 0 : index
    %12 = vector.load %arg2[%c0_12, %c0_13] : memref<120x16xf32, #tpu.memory_space<vmem>>, vector<24x8xf32>
    %c24 = arith.constant 24 : index
    %c0_14 = arith.constant 0 : index
    %13 = vector.load %arg2[%c24, %c0_14] : memref<120x16xf32, #tpu.memory_space<vmem>>, vector<16x16xf32>
    %c40 = arith.constant 40 : index
    %c0_15 = arith.constant 0 : index
    %14 = vector.load %arg2[%c40, %c0_15] : memref<120x16xf32, #tpu.memory_space<vmem>>, vector<28x16xf32>
    %c72 = arith.constant 72 : index
    %c0_16 = arith.constant 0 : index
    %15 = vector.load %arg2[%c72, %c0_16] : memref<120x16xf32, #tpu.memory_space<vmem>>, vector<16x1xf32>
    %c88 = arith.constant 88 : index
    %c0_17 = arith.constant 0 : index
    %16 = vector.load %arg2[%c88, %c0_17] : memref<120x16xf32, #tpu.memory_space<vmem>>, vector<28x1xf32>
    %cst = arith.constant dense<0.000000e+00> : vector<24x256xf32>
    %17 = tpu.matmul %12, %0, %cst {dimension_numbers = #tpu.dot_dimension_numbers<[1], [0], [0], [1], [0, 0, 1, 1], [], []>} : vector<24x8xf32>, vector<8x256xf32>, vector<24x256xf32> -> vector<24x256xf32>
    %18 = vector.extract_strided_slice %17 {offsets = [0, 0], sizes = [16, 256], strides = [1, 1]} : vector<24x256xf32> to vector<16x256xf32>
    %cst_18 = arith.constant 0.000000e+00 : f32
    %19 = vector.broadcast %cst_18 : f32 to vector<16x256xf32>
    %20 = arith.maximumf %18, %19 : vector<16x256xf32>
    %21 = vector.extract_strided_slice %17 {offsets = [16, 0], sizes = [5, 256], strides = [1, 1]} : vector<24x256xf32> to vector<5x256xf32>
    %cst_19 = arith.constant dense<0.000000e+00> : vector<16x256xf32>
    %22 = tpu.matmul %13, %20, %cst_19 {dimension_numbers = #tpu.dot_dimension_numbers<[1], [0], [0], [1], [0, 0, 1, 1], [], []>} : vector<16x16xf32>, vector<16x256xf32>, vector<16x256xf32> -> vector<16x256xf32>
    %23 = vector.broadcast %15 : vector<16x1xf32> to vector<16x256xf32>
    %24 = arith.addf %22, %23 : vector<16x256xf32>
    %cst_20 = arith.constant 0.000000e+00 : f32
    %25 = vector.broadcast %cst_20 : f32 to vector<16x256xf32>
    %26 = arith.maximumf %24, %25 : vector<16x256xf32>
    %cst_21 = arith.constant dense<0.000000e+00> : vector<28x256xf32>
    %27 = tpu.matmul %14, %26, %cst_21 {dimension_numbers = #tpu.dot_dimension_numbers<[1], [0], [0], [1], [0, 0, 1, 1], [], []>} : vector<28x16xf32>, vector<16x256xf32>, vector<28x256xf32> -> vector<28x256xf32>
    %28 = vector.broadcast %16 : vector<28x1xf32> to vector<28x256xf32>
    %29 = arith.addf %27, %28 : vector<28x256xf32>
    %30 = math.absf %29 : vector<28x256xf32>
    %31 = vector.extract_strided_slice %30 {offsets = [0, 0], sizes = [1, 256], strides = [1, 1]} : vector<28x256xf32> to vector<1x256xf32>
    %32 = vector.extract_strided_slice %30 {offsets = [1, 0], sizes = [1, 256], strides = [1, 1]} : vector<28x256xf32> to vector<1x256xf32>
    %33 = vector.extract_strided_slice %30 {offsets = [2, 0], sizes = [1, 256], strides = [1, 1]} : vector<28x256xf32> to vector<1x256xf32>
    %34 = vector.extract_strided_slice %30 {offsets = [3, 0], sizes = [1, 256], strides = [1, 1]} : vector<28x256xf32> to vector<1x256xf32>
    %35 = vector.extract_strided_slice %30 {offsets = [4, 0], sizes = [1, 256], strides = [1, 1]} : vector<28x256xf32> to vector<1x256xf32>
    %36 = vector.extract_strided_slice %30 {offsets = [5, 0], sizes = [1, 256], strides = [1, 1]} : vector<28x256xf32> to vector<1x256xf32>
    %37 = vector.extract_strided_slice %30 {offsets = [6, 0], sizes = [1, 256], strides = [1, 1]} : vector<28x256xf32> to vector<1x256xf32>
    %38 = vector.extract_strided_slice %30 {offsets = [8, 0], sizes = [1, 256], strides = [1, 1]} : vector<28x256xf32> to vector<1x256xf32>
    %39 = vector.extract_strided_slice %30 {offsets = [9, 0], sizes = [1, 256], strides = [1, 1]} : vector<28x256xf32> to vector<1x256xf32>
    %40 = vector.extract_strided_slice %30 {offsets = [10, 0], sizes = [1, 256], strides = [1, 1]} : vector<28x256xf32> to vector<1x256xf32>
    %41 = vector.extract_strided_slice %30 {offsets = [11, 0], sizes = [1, 256], strides = [1, 1]} : vector<28x256xf32> to vector<1x256xf32>
    %42 = vector.extract_strided_slice %30 {offsets = [12, 0], sizes = [1, 256], strides = [1, 1]} : vector<28x256xf32> to vector<1x256xf32>
    %43 = vector.extract_strided_slice %30 {offsets = [13, 0], sizes = [1, 256], strides = [1, 1]} : vector<28x256xf32> to vector<1x256xf32>
    %44 = vector.extract_strided_slice %30 {offsets = [14, 0], sizes = [1, 256], strides = [1, 1]} : vector<28x256xf32> to vector<1x256xf32>
    %45 = vector.extract_strided_slice %30 {offsets = [15, 0], sizes = [1, 256], strides = [1, 1]} : vector<28x256xf32> to vector<1x256xf32>
    %46 = vector.extract_strided_slice %30 {offsets = [16, 0], sizes = [1, 256], strides = [1, 1]} : vector<28x256xf32> to vector<1x256xf32>
    %47 = vector.extract_strided_slice %30 {offsets = [17, 0], sizes = [1, 256], strides = [1, 1]} : vector<28x256xf32> to vector<1x256xf32>
    %48 = vector.extract_strided_slice %30 {offsets = [18, 0], sizes = [1, 256], strides = [1, 1]} : vector<28x256xf32> to vector<1x256xf32>
    %49 = vector.extract_strided_slice %30 {offsets = [19, 0], sizes = [1, 256], strides = [1, 1]} : vector<28x256xf32> to vector<1x256xf32>
    %50 = vector.extract_strided_slice %30 {offsets = [20, 0], sizes = [1, 256], strides = [1, 1]} : vector<28x256xf32> to vector<1x256xf32>
    %51 = vector.extract_strided_slice %30 {offsets = [21, 0], sizes = [1, 256], strides = [1, 1]} : vector<28x256xf32> to vector<1x256xf32>
    %52 = vector.extract_strided_slice %30 {offsets = [22, 0], sizes = [1, 256], strides = [1, 1]} : vector<28x256xf32> to vector<1x256xf32>
    %53 = vector.extract_strided_slice %30 {offsets = [23, 0], sizes = [1, 256], strides = [1, 1]} : vector<28x256xf32> to vector<1x256xf32>
    %54 = vector.extract_strided_slice %30 {offsets = [24, 0], sizes = [1, 256], strides = [1, 1]} : vector<28x256xf32> to vector<1x256xf32>
    %55 = vector.extract_strided_slice %30 {offsets = [25, 0], sizes = [1, 256], strides = [1, 1]} : vector<28x256xf32> to vector<1x256xf32>
    %56 = vector.extract_strided_slice %30 {offsets = [26, 0], sizes = [1, 256], strides = [1, 1]} : vector<28x256xf32> to vector<1x256xf32>
    %57 = vector.extract_strided_slice %30 {offsets = [27, 0], sizes = [1, 256], strides = [1, 1]} : vector<28x256xf32> to vector<1x256xf32>
    %58 = arith.mulf %49, %2 : vector<1x256xf32>
    %59 = arith.subf %48, %58 : vector<1x256xf32>
    %60 = arith.mulf %50, %7 : vector<1x256xf32>
    %61 = arith.subf %59, %60 : vector<1x256xf32>
    %62 = arith.addf %8, %9 : vector<1x256xf32>
    %cst_22 = arith.constant 2.000000e+00 : f32
    %63 = vector.broadcast %cst_22 : f32 to vector<1x256xf32>
    %64 = arith.divf %38, %63 : vector<1x256xf32>
    %65 = arith.subf %39, %64 : vector<1x256xf32>
    %66 = arith.mulf %43, %45 : vector<1x256xf32>
    %67 = arith.subf %62, %66 : vector<1x256xf32>
    %68 = arith.mulf %41, %67 : vector<1x256xf32>
    %69 = math.tanh %68 : vector<1x256xf32>
    %70 = arith.mulf %44, %45 : vector<1x256xf32>
    %71 = arith.subf %62, %70 : vector<1x256xf32>
    %72 = arith.mulf %42, %71 : vector<1x256xf32>
    %73 = math.tanh %72 : vector<1x256xf32>
    %74 = arith.subf %69, %73 : vector<1x256xf32>
    %cst_23 = arith.constant 2.000000e+00 : f32
    %75 = vector.broadcast %cst_23 : f32 to vector<1x256xf32>
    %76 = arith.addf %74, %75 : vector<1x256xf32>
    %77 = arith.mulf %65, %76 : vector<1x256xf32>
    %78 = arith.addf %38, %77 : vector<1x256xf32>
    %79 = arith.mulf %47, %40 : vector<1x256xf32>
    %80 = arith.mulf %79, %10 : vector<1x256xf32>
    %81 = tpu.reciprocal %46 {approx = true} : vector<1x256xf32> -> vector<1x256xf32>
    %82 = arith.mulf %46, %81 : vector<1x256xf32>
    %cst_24 = arith.constant 2.000000e+00 : f32
    %83 = vector.broadcast %cst_24 : f32 to vector<1x256xf32>
    %84 = arith.subf %83, %82 : vector<1x256xf32>
    %85 = arith.mulf %81, %84 : vector<1x256xf32>
    %86 = arith.mulf %80, %85 : vector<1x256xf32>
    %87 = arith.mulf %54, %6 : vector<1x256xf32>
    %88 = arith.mulf %87, %56 : vector<1x256xf32>
    %89 = arith.addf %53, %88 : vector<1x256xf32>
    %90 = arith.mulf %89, %3 : vector<1x256xf32>
    %91 = math.absf %3 : vector<1x256xf32>
    %92 = arith.addf %55, %91 : vector<1x256xf32>
    %93 = tpu.reciprocal %92 {approx = true} : vector<1x256xf32> -> vector<1x256xf32>
    %94 = arith.mulf %92, %93 : vector<1x256xf32>
    %cst_25 = arith.constant 2.000000e+00 : f32
    %95 = vector.broadcast %cst_25 : f32 to vector<1x256xf32>
    %96 = arith.subf %95, %94 : vector<1x256xf32>
    %97 = arith.mulf %93, %96 : vector<1x256xf32>
    %98 = arith.mulf %90, %97 : vector<1x256xf32>
    %cst_26 = arith.constant 0.000000e+00 : f32
    %99 = vector.broadcast %cst_26 : f32 to vector<1x256xf32>
    %100 = arith.subf %99, %37 : vector<1x256xf32>
    %101 = arith.mulf %100, %8 : vector<1x256xf32>
    %102 = arith.mulf %45, %11 : vector<1x256xf32>
    %103 = arith.addf %101, %102 : vector<1x256xf32>
    %cst_27 = arith.constant 0.000000e+00 : f32
    %104 = vector.broadcast %cst_27 : f32 to vector<1x256xf32>
    %105 = arith.subf %104, %78 : vector<1x256xf32>
    %106 = arith.mulf %105, %9 : vector<1x256xf32>
    %107 = arith.mulf %37, %8 : vector<1x256xf32>
    %108 = arith.addf %106, %107 : vector<1x256xf32>
    %cst_28 = arith.constant 0.000000e+00 : f32
    %109 = vector.broadcast %cst_28 : f32 to vector<1x256xf32>
    %110 = arith.subf %109, %40 : vector<1x256xf32>
    %111 = arith.mulf %110, %10 : vector<1x256xf32>
    %112 = arith.mulf %78, %9 : vector<1x256xf32>
    %113 = arith.addf %111, %112 : vector<1x256xf32>
    %114 = arith.addf %34, %36 : vector<1x256xf32>
    %cst_29 = arith.constant 0.000000e+00 : f32
    %115 = vector.broadcast %cst_29 : f32 to vector<1x256xf32>
    %116 = arith.subf %115, %114 : vector<1x256xf32>
    %117 = arith.mulf %116, %4 : vector<1x256xf32>
    %118 = arith.mulf %33, %5 : vector<1x256xf32>
    %119 = arith.addf %117, %118 : vector<1x256xf32>
    %120 = arith.addf %119, %1 : vector<1x256xf32>
    %121 = arith.addf %33, %35 : vector<1x256xf32>
    %cst_30 = arith.constant 0.000000e+00 : f32
    %122 = vector.broadcast %cst_30 : f32 to vector<1x256xf32>
    %123 = arith.subf %122, %121 : vector<1x256xf32>
    %124 = arith.mulf %123, %5 : vector<1x256xf32>
    %125 = arith.mulf %34, %4 : vector<1x256xf32>
    %126 = arith.addf %124, %125 : vector<1x256xf32>
    %cst_31 = arith.constant 0.000000e+00 : f32
    %127 = vector.broadcast %cst_31 : f32 to vector<1x256xf32>
    %128 = arith.subf %127, %51 : vector<1x256xf32>
    %129 = arith.subf %7, %4 : vector<1x256xf32>
    %130 = arith.mulf %128, %129 : vector<1x256xf32>
    %cst_32 = arith.constant 0.000000e+00 : f32
    %131 = vector.broadcast %cst_32 : f32 to vector<1x256xf32>
    %132 = arith.subf %131, %57 : vector<1x256xf32>
    %133 = arith.mulf %132, %6 : vector<1x256xf32>
    %134 = arith.mulf %57, %4 : vector<1x256xf32>
    %135 = arith.addf %133, %134 : vector<1x256xf32>
    %136 = arith.addf %61, %86 : vector<1x256xf32>
    %137 = arith.subf %136, %52 : vector<1x256xf32>
    %138 = arith.mulf %31, %2 : vector<1x256xf32>
    %139 = arith.subf %137, %138 : vector<1x256xf32>
    %140 = arith.mulf %32, %3 : vector<1x256xf32>
    %141 = arith.addf %139, %140 : vector<1x256xf32>
    %cst_33 = arith.constant 0.000000e+00 : f32
    %142 = vector.broadcast %cst_33 : f32 to vector<1x256xf32>
    %143 = arith.subf %142, %98 : vector<1x256xf32>
    %144 = arith.mulf %31, %2 : vector<1x256xf32>
    %145 = arith.addf %143, %144 : vector<1x256xf32>
    %146 = arith.mulf %32, %3 : vector<1x256xf32>
    %147 = arith.subf %145, %146 : vector<1x256xf32>
    %c0_34 = arith.constant 0 : index
    %c0_35 = arith.constant 0 : index
    %148 = vector.load %arg3[%c0_34, %c0_35] : memref<5x256xf32, #tpu.memory_space<vmem>>, vector<5x256xf32>
    tpu.vector_store %arg3[%c0_34, %c0_35], %21 {strides = array<i32>} : memref<5x256xf32, #tpu.memory_space<vmem>>, vector<5x256xf32>,
    %149 = arith.addf %2, %141 : vector<1x256xf32>
    %c0_36 = arith.constant 0 : index
    %c0_37 = arith.constant 0 : index
    %150 = vector.load %arg4[%c0_36, %c0_37] : memref<9x256xf32, #tpu.memory_space<vmem>>, vector<1x256xf32>
    tpu.vector_store %arg4[%c0_36, %c0_37], %149 {strides = array<i32>} : memref<9x256xf32, #tpu.memory_space<vmem>>, vector<1x256xf32>,
    %151 = arith.addf %3, %147 : vector<1x256xf32>
    %c1 = arith.constant 1 : index
    %c0_38 = arith.constant 0 : index
    %152 = vector.load %arg4[%c1, %c0_38] : memref<9x256xf32, #tpu.memory_space<vmem>>, vector<1x256xf32>
    tpu.vector_store %arg4[%c1, %c0_38], %151 {strides = array<i32>} : memref<9x256xf32, #tpu.memory_space<vmem>>, vector<1x256xf32>,
    %153 = arith.addf %4, %120 : vector<1x256xf32>
    %c2 = arith.constant 2 : index
    %c0_39 = arith.constant 0 : index
    %154 = vector.load %arg4[%c2, %c0_39] : memref<9x256xf32, #tpu.memory_space<vmem>>, vector<1x256xf32>
    tpu.vector_store %arg4[%c2, %c0_39], %153 {strides = array<i32>} : memref<9x256xf32, #tpu.memory_space<vmem>>, vector<1x256xf32>,
    %155 = arith.addf %5, %126 : vector<1x256xf32>
    %c3 = arith.constant 3 : index
    %c0_40 = arith.constant 0 : index
    %156 = vector.load %arg4[%c3, %c0_40] : memref<9x256xf32, #tpu.memory_space<vmem>>, vector<1x256xf32>
    tpu.vector_store %arg4[%c3, %c0_40], %155 {strides = array<i32>} : memref<9x256xf32, #tpu.memory_space<vmem>>, vector<1x256xf32>,
    %157 = arith.addf %6, %135 : vector<1x256xf32>
    %c4 = arith.constant 4 : index
    %c0_41 = arith.constant 0 : index
    %158 = vector.load %arg4[%c4, %c0_41] : memref<9x256xf32, #tpu.memory_space<vmem>>, vector<1x256xf32>
    tpu.vector_store %arg4[%c4, %c0_41], %157 {strides = array<i32>} : memref<9x256xf32, #tpu.memory_space<vmem>>, vector<1x256xf32>,
    %159 = arith.addf %7, %130 : vector<1x256xf32>
    %c5 = arith.constant 5 : index
    %c0_42 = arith.constant 0 : index
    %160 = vector.load %arg4[%c5, %c0_42] : memref<9x256xf32, #tpu.memory_space<vmem>>, vector<1x256xf32>
    tpu.vector_store %arg4[%c5, %c0_42], %159 {strides = array<i32>} : memref<9x256xf32, #tpu.memory_space<vmem>>, vector<1x256xf32>,
    %161 = arith.addf %8, %103 : vector<1x256xf32>
    %c6 = arith.constant 6 : index
    %c0_43 = arith.constant 0 : index
    %162 = vector.load %arg4[%c6, %c0_43] : memref<9x256xf32, #tpu.memory_space<vmem>>, vector<1x256xf32>
    tpu.vector_store %arg4[%c6, %c0_43], %161 {strides = array<i32>} : memref<9x256xf32, #tpu.memory_space<vmem>>, vector<1x256xf32>,
    %163 = arith.addf %9, %108 : vector<1x256xf32>
    %c7 = arith.constant 7 : index
    %c0_44 = arith.constant 0 : index
    %164 = vector.load %arg4[%c7, %c0_44] : memref<9x256xf32, #tpu.memory_space<vmem>>, vector<1x256xf32>
    tpu.vector_store %arg4[%c7, %c0_44], %163 {strides = array<i32>} : memref<9x256xf32, #tpu.memory_space<vmem>>, vector<1x256xf32>,
    %165 = arith.addf %10, %113 : vector<1x256xf32>
    %c8_45 = arith.constant 8 : index
    %c0_46 = arith.constant 0 : index
    %166 = vector.load %arg4[%c8_45, %c0_46] : memref<9x256xf32, #tpu.memory_space<vmem>>, vector<1x256xf32>
    tpu.vector_store %arg4[%c8_45, %c0_46], %165 {strides = array<i32>} : memref<9x256xf32, #tpu.memory_space<vmem>>, vector<1x256xf32>,
    return
  }
  func.func @transform_0(%arg0: i32) -> (i32, i32) {
    %c0_i32 = arith.constant 0 : i32
    %c0_i32_0 = arith.constant 0 : i32
    return %c0_i32, %arg0 : i32, i32
  }
  func.func @transform_1(%arg0: i32) -> (i32, i32) {
    %c0_i32 = arith.constant 0 : i32
    %c0_i32_0 = arith.constant 0 : i32
    %c0_i32_1 = arith.constant 0 : i32
    return %c0_i32, %c0_i32_0 : i32, i32
  }
  func.func @transform_2(%arg0: i32) -> (i32, i32) {
    %c0_i32 = arith.constant 0 : i32
    %c0_i32_0 = arith.constant 0 : i32
    return %c0_i32, %arg0 : i32, i32
  }
  func.func @transform_3(%arg0: i32) -> (i32, i32) {
    %c0_i32 = arith.constant 0 : i32
    %c0_i32_0 = arith.constant 0 : i32
    return %c0_i32, %arg0 : i32, i32
  }
}

</mosaic_0001>

<llo_original>
// kernel: tpu_custom_call.1
$region0: #{tpu_custom_call.1}
  #allocation0 [shape = 'u32[]', space=smem, size = 0x4, offset = 0x4, fixed_abs, tag = 'smem constant byte address 0x4 - core index']
  #allocation1 [shape = 'u32[144,128]{1,0:T(1,128)}', space=vmem, size = 0x12000, scoped, tag = 'internal scratch']
  %s0 = inlined_call_operand.vmem [shape: f32[19,256], index: 0, kind: input, shape index: {}]
  %s1 = inlined_call_operand.vmem [shape: f32[120,16], index: 1, kind: input, shape index: {}]
  %s2 = inlined_call_operand.hbm [shape: f32[5,256], index: 2, kind: output, shape index: {0}]
  %s3 = inlined_call_operand.hbm [shape: f32[9,256], index: 3, kind: output, shape index: {1}]
  %4 = xla_tuple %s2, %s3
  %s5 = sld [smem:[#allocation0]]
  $region26: #{tpu_custom_call.1} parent=0
    _
  %s7 = ssub.s32 1, %s5
  %s8 = scalar_select 0, %s7, %s5
  $region1: #{tpu_custom_call.1} parent=0
    #allocation2 [shape = 'u8[8192]{0}', space=vmem, size = 0x2000, scoped, tag = 'output window, operand 0, single buffered']
    #allocation3 [shape = 's32[1]{0}', space=sflag, size = 0x4, scoped, tag = 'scoped memory for tpu_custom_call.1']
    #allocation4 [shape = 'u8[16384]{0}', space=vmem, size = 0x4000, scoped, tag = 'output window, operand 1, single buffered']
    #allocation5 [shape = 's32[1]{0}', space=sflag, size = 0x4, scoped, tag = 'scoped memory for tpu_custom_call.1']
    %9 = vsyncpa [#allocation3], 0
    %10 = vsyncpa [#allocation5], 0
    // Predicated region
    $region2: #{tpu_custom_call.1} parent=1 // pred_check
      _
    $region3: #{tpu_custom_call.1} parent=1 // pred_check_branch
      %12 = sbr.rel (0) target = $region5
    $region4: #{tpu_custom_call.1} parent=1 // pred_region
      _
    $region5: #{tpu_custom_call.1} parent=1 // pred_fallthru
      _
    // Predicated region
    $region6: #{tpu_custom_call.1} parent=1 // pred_check
      _
    $region7: #{tpu_custom_call.1} parent=1 // pred_check_branch
      %14 = sbr.rel (0) target = $region9
    $region8: #{tpu_custom_call.1} parent=1 // pred_region
      _
    $region9: #{tpu_custom_call.1} parent=1 // pred_fallthru
      _
    %v15 = vld [vmem:[%s0] sm:$0xff]
    %v16 = vld [vmem:[%s0 + $0x8] sm:$0xff]
    %s17 = scalar_lea.vmem %s0, 16
    %v18 = vld [vmem:[%s17] ss:$8 sm:$0x3]
    %s19 = scalar_lea.vmem %s0, 17
    %v20 = vld [vmem:[%s19] ss:$8 sm:$0x3]
    %s21 = scalar_lea.vmem %s0, 18
    %v22 = vld [vmem:[%s21] ss:$8 sm:$0x3]
    %s23 = scalar_lea.vmem %s0, 19
    %v24 = vld [vmem:[%s23] ss:$8 sm:$0x3]
    %s25 = scalar_lea.vmem %s0, 20
    %v26 = vld [vmem:[%s25] ss:$8 sm:$0x3]
    %s27 = scalar_lea.vmem %s0, 21
    %v28 = vld [vmem:[%s27] ss:$8 sm:$0x3]
    %s29 = scalar_lea.vmem %s0, 22
    %v30 = vld [vmem:[%s29] ss:$8 sm:$0x3]
    %s31 = scalar_lea.vmem %s0, 23
    %v32 = vld [vmem:[%s31] ss:$8 sm:$0x3]
    %s33 = scalar_lea.vmem %s0, 32
    %v34 = vld [vmem:[%s33] ss:$8 sm:$0x3]
    %s35 = scalar_lea.vmem %s0, 33
    %v36 = vld [vmem:[%s35] ss:$8 sm:$0x3]
    %s37 = scalar_lea.vmem %s0, 34
    %v38 = vld [vmem:[%s37] ss:$8 sm:$0x3]
    %v39 = vld [vmem:[%s1] sm:$0xff]
    %v40 = vld [vmem:[%s1 + $0x8] sm:$0xff]
    %v41 = vld [vmem:[%s1 + $0x10] sm:$0xff]
    %v42 = vld [vmem:[%s1 + $0x18] sm:$0xff]
    %v43 = vld [vmem:[%s1 + $0x20] sm:$0xff]
    %v44 = vld [vmem:[%s1 + $0x28] sm:$0xff]
    %v45 = vld [vmem:[%s1 + $0x30] sm:$0xff]
    %v46 = vld [vmem:[%s1 + $0x38] sm:$0xff]
    %v47 = vld [vmem:[%s1 + $0x40] sm:$0xf]
    %v48 = vld [vmem:[%s1 + $0x48] sm:$0xff]
    %v49 = vld [vmem:[%s1 + $0x50] sm:$0xff]
    %v50 = vld [vmem:[%s1 + $0x58] sm:$0xff]
    %v51 = vld [vmem:[%s1 + $0x60] sm:$0xff]
    %v52 = vld [vmem:[%s1 + $0x68] sm:$0xff]
    %v53 = vld [vmem:[%s1 + $0x70] sm:$0xf]
    %vm54 = vcmask 64512
    %v56 = vsel %vm54, %v39, 0
    %v59 = vsel %vm54, %v40, 0
    %v62 = vsel %vm54, %v41, 0
    %64 = vmatprep.subr.mxu0 %v16
    %65 = vmatpush1.msra.mxu0 %v15
    %66 = vmatprep.subr.mxu0 0.0
    %67 = vmatpush1.msra.mxu0 0.0
    %68 = vmatprep.subr.mxu0 0.0
    %69 = vmatpush1.msra.mxu0 0.0
    %70 = vmatprep.subr.mxu0 0.0
    %71 = vmatpush1.msra.mxu0 0.0
    %72 = vmatprep.subr.mxu0 0.0
    %73 = vmatpush1.msra.mxu0 0.0
    %74 = vmatprep.subr.mxu0 0.0
    %75 = vmatpush1.msra.mxu0 0.0
    %76 = vmatprep.subr.mxu0 0.0
    %77 = vmatpush1.msra.mxu0 0.0
    %78 = vmatprep.subr.mxu0 0.0
    %79 = vmatpush1.msra.mxu0 0.0
    %80 = vmatprep.subr.mxu0 0.0
    %81 = vmatpush1.msra.mxu0 0.0
    %82 = vmatprep.subr.mxu0 0.0
    %83 = vmatpush1.msra.mxu0 0.0
    %84 = vmatprep.subr.mxu0 0.0
    %85 = vmatpush1.msra.mxu0 0.0
    %86 = vmatprep.subr.mxu0 0.0
    %87 = vmatpush1.msra.mxu0 0.0
    %88 = vmatprep.subr.mxu0 0.0
    %89 = vmatpush1.msra.mxu0 0.0
    %90 = vmatprep.subr.mxu0 0.0
    %91 = vmatpush1.msra.mxu0 0.0
    %92 = vmatprep.subr.mxu0 0.0
    %93 = vmatpush1.msra.mxu0 0.0
    %94 = vmatprep.subr.mxu0 0.0
    %95 = vmatpush1.msra.mxu0 0.0
    %96 = vmatprep.subr.mxu0 0.0
    %97 = vmatpush1.msra.mxu0 0.0
    %98 = vmatprep.subr.mxu0 0.0
    %99 = vmatpush1.msra.mxu0 0.0
    %100 = vmatprep.subr.mxu0 0.0
    %101 = vmatpush1.msra.mxu0 0.0
    %102 = vmatprep.subr.mxu0 0.0
    %103 = vmatpush1.msra.mxu0 0.0
    %104 = vmatprep.subr.mxu0 0.0
    %105 = vmatpush1.msra.mxu0 0.0
    %106 = vmatprep.subr.mxu0 0.0
    %107 = vmatpush1.msra.mxu0 0.0
    %108 = vmatprep.subr.mxu0 0.0
    %109 = vmatpush1.msra.mxu0 0.0
    %110 = vmatprep.subr.mxu0 0.0
    %111 = vmatpush1.msra.mxu0 0.0
    %112 = vmatprep.subr.mxu0 0.0
    %113 = vmatpush1.msra.mxu0 0.0
    %114 = vmatprep.subr.mxu0 0.0
    %115 = vmatpush1.msra.mxu0 0.0
    %116 = vmatprep.subr.mxu0 0.0
    %117 = vmatpush1.msra.mxu0 0.0
    %118 = vmatprep.subr.mxu0 0.0
    %119 = vmatpush1.msra.mxu0 0.0
    %120 = vmatprep.subr.mxu0 0.0
    %121 = vmatpush1.msra.mxu0 0.0
    %122 = vmatprep.subr.mxu0 0.0
    %123 = vmatpush1.msra.mxu0 0.0
    %124 = vmatprep.subr.mxu0 0.0
    %125 = vmatpush1.msra.mxu0 0.0
    %126 = vmatprep.subr.mxu0 0.0
    %127 = vmatpush1.msra.mxu0 0.0
    %128 = vmatprep.mubr.f32.mxu0 0.0
    %129 = vmatmul.mubr.f32.gmra.mrb[0].mxu0 %v56
    %v130 = vpop.f32.mrb[0].mxu0
    %v131 = vadd.f32 0.0, %v130
    %v132 = vpop.f32.mrb[0].mxu0
    %v133 = vadd.f32 0.0, %v132
    %134 = vmatprep.mubr.f32.mxu0 0.0
    %135 = vmatmul.mubr.f32.gmra.mrb[0].mxu0 %v59
    %v136 = vpop.f32.mrb[0].mxu0
    %v137 = vadd.f32 0.0, %v136
    %v138 = vpop.f32.mrb[0].mxu0
    %v139 = vadd.f32 0.0, %v138
    %140 = vmatprep.mubr.f32.mxu0 0.0
    %141 = vmatmul.mubr.f32.gmra.mrb[0].mxu0 %v62
    %v142 = vpop.f32.mrb[0].mxu0
    %v143 = vadd.f32 0.0, %v142
    %v144 = vpop.f32.mrb[0].mxu0
    %v145 = vadd.f32 0.0, %v144
    %146 = vdwg.mxu0
    %v147 = vmax.f32 %v131, 0.0
    %v148 = vmax.f32 %v133, 0.0
    %v149 = vmax.f32 %v137, 0.0
    %v150 = vmax.f32 %v139, 0.0
    %152 = vset.pattern.permute.xlu0 0
    %153 = vperm.xlu0 %152, %v48
    %v154 = vpop.permute.xlu0 %153
    %157 = vset.pattern.permute.xlu0 0
    %158 = vperm.xlu0 %157, %v49
    %v159 = vpop.permute.xlu0 %158
    %vm161 = vcmask 130048
    %v163 = vsel %vm161, %v42, 0
    %v166 = vsel %vm161, %v43, 0
    %168 = vmatprep.subr.mxu0 %v148
    %169 = vmatpush1.msra.mxu0 %v147
    %170 = vmatprep.subr.mxu0 %v150
    %171 = vmatpush1.msra.mxu0 %v149
    %172 = vmatprep.subr.mxu0 0.0
    %173 = vmatpush1.msra.mxu0 0.0
    %174 = vmatprep.subr.mxu0 0.0
    %175 = vmatpush1.msra.mxu0 0.0
    %176 = vmatprep.subr.mxu0 0.0
    %177 = vmatpush1.msra.mxu0 0.0
    %178 = vmatprep.subr.mxu0 0.0
    %179 = vmatpush1.msra.mxu0 0.0
    %180 = vmatprep.subr.mxu0 0.0
    %181 = vmatpush1.msra.mxu0 0.0
    %182 = vmatprep.subr.mxu0 0.0
    %183 = vmatpush1.msra.mxu0 0.0
    %184 = vmatprep.subr.mxu0 0.0
    %185 = vmatpush1.msra.mxu0 0.0
    %186 = vmatprep.subr.mxu0 0.0
    %187 = vmatpush1.msra.mxu0 0.0
    %188 = vmatprep.subr.mxu0 0.0
    %189 = vmatpush1.msra.mxu0 0.0
    %190 = vmatprep.subr.mxu0 0.0
    %191 = vmatpush1.msra.mxu0 0.0
    %192 = vmatprep.subr.mxu0 0.0
    %193 = vmatpush1.msra.mxu0 0.0
    %194 = vmatprep.subr.mxu0 0.0
    %195 = vmatpush1.msra.mxu0 0.0
    %196 = vmatprep.subr.mxu0 0.0
    %197 = vmatpush1.msra.mxu0 0.0
    %198 = vmatprep.subr.mxu0 0.0
    %199 = vmatpush1.msra.mxu0 0.0
    %200 = vmatprep.subr.mxu0 0.0
    %201 = vmatpush1.msra.mxu0 0.0
    %202 = vmatprep.subr.mxu0 0.0
    %203 = vmatpush1.msra.mxu0 0.0
    %204 = vmatprep.subr.mxu0 0.0
    %205 = vmatpush1.msra.mxu0 0.0
    %206 = vmatprep.subr.mxu0 0.0
    %207 = vmatpush1.msra.mxu0 0.0
    %208 = vmatprep.subr.mxu0 0.0
    %209 = vmatpush1.msra.mxu0 0.0
    %210 = vmatprep.subr.mxu0 0.0
    %211 = vmatpush1.msra.mxu0 0.0
    %212 = vmatprep.subr.mxu0 0.0
    %213 = vmatpush1.msra.mxu0 0.0
    %214 = vmatprep.subr.mxu0 0.0
    %215 = vmatpush1.msra.mxu0 0.0
    %216 = vmatprep.subr.mxu0 0.0
    %217 = vmatpush1.msra.mxu0 0.0
    %218 = vmatprep.subr.mxu0 0.0
    %219 = vmatpush1.msra.mxu0 0.0
    %220 = vmatprep.subr.mxu0 0.0
    %221 = vmatpush1.msra.mxu0 0.0
    %222 = vmatprep.subr.mxu0 0.0
    %223 = vmatpush1.msra.mxu0 0.0
    %224 = vmatprep.subr.mxu0 0.0
    %225 = vmatpush1.msra.mxu0 0.0
    %226 = vmatprep.subr.mxu0 0.0
    %227 = vmatpush1.msra.mxu0 0.0
    %228 = vmatprep.subr.mxu0 0.0
    %229 = vmatpush1.msra.mxu0 0.0
    %230 = vmatprep.subr.mxu0 0.0
    %231 = vmatpush1.msra.mxu0 0.0
    %232 = vmatprep.mubr.f32.mxu0 0.0
    %233 = vmatmul.mubr.f32.gmra.mrb[0].mxu0 %v163
    %v234 = vpop.f32.mrb[0].mxu0
    %v235 = vadd.f32 %v154, %v234
    %v236 = vpop.f32.mrb[0].mxu0
    %v237 = vadd.f32 %v154, %v236
    %238 = vmatprep.mubr.f32.mxu0 0.0
    %239 = vmatmul.mubr.f32.gmra.mrb[0].mxu0 %v166
    %v240 = vpop.f32.mrb[0].mxu0
    %v241 = vadd.f32 %v159, %v240
    %v242 = vpop.f32.mrb[0].mxu0
    %v243 = vadd.f32 %v159, %v242
    %244 = vdwg.mxu0
    %v245 = vmax.f32 %v235, 0.0
    %v246 = vmax.f32 %v237, 0.0
    %v247 = vmax.f32 %v241, 0.0
    %v248 = vmax.f32 %v243, 0.0
    %250 = vset.pattern.permute.xlu0 0
    %251 = vperm.xlu0 %250, %v50
    %v252 = vpop.permute.xlu0 %251
    %255 = vset.pattern.permute.xlu0 0
    %256 = vperm.xlu0 %255, %v51
    %v257 = vpop.permute.xlu0 %256
    %260 = vset.pattern.permute.xlu0 0
    %261 = vperm.xlu0 %260, %v52
    %v262 = vpop.permute.xlu0 %261
    %265 = vset.pattern.permute.xlu0 0
    %266 = vperm.xlu0 %265, %v53
    %v267 = vpop.permute.xlu0 %266
    %v270 = vsel %vm161, %v44, 0
    %v273 = vsel %vm161, %v45, 0
    %v276 = vsel %vm161, %v46, 0
    %v279 = vsel %vm161, %v47, 0
    %281 = vmatprep.subr.mxu0 %v246
    %282 = vmatpush1.msra.mxu0 %v245
    %283 = vmatprep.subr.mxu0 %v248
    %284 = vmatpush1.msra.mxu0 %v247
    %285 = vmatprep.subr.mxu0 0.0
    %286 = vmatpush1.msra.mxu0 0.0
    %287 = vmatprep.subr.mxu0 0.0
    %288 = vmatpush1.msra.mxu0 0.0
    %289 = vmatprep.subr.mxu0 0.0
    %290 = vmatpush1.msra.mxu0 0.0
    %291 = vmatprep.subr.mxu0 0.0
    %292 = vmatpush1.msra.mxu0 0.0
    %293 = vmatprep.subr.mxu0 0.0
    %294 = vmatpush1.msra.mxu0 0.0
    %295 = vmatprep.subr.mxu0 0.0
    %296 = vmatpush1.msra.mxu0 0.0
    %297 = vmatprep.subr.mxu0 0.0
    %298 = vmatpush1.msra.mxu0 0.0
    %299 = vmatprep.subr.mxu0 0.0
    %300 = vmatpush1.msra.mxu0 0.0
    %301 = vmatprep.subr.mxu0 0.0
    %302 = vmatpush1.msra.mxu0 0.0
    %303 = vmatprep.subr.mxu0 0.0
    %304 = vmatpush1.msra.mxu0 0.0
    %305 = vmatprep.subr.mxu0 0.0
    %306 = vmatpush1.msra.mxu0 0.0
    %307 = vmatprep.subr.mxu0 0.0
    %308 = vmatpush1.msra.mxu0 0.0
    %309 = vmatprep.subr.mxu0 0.0
    %310 = vmatpush1.msra.mxu0 0.0
    %311 = vmatprep.subr.mxu0 0.0
    %312 = vmatpush1.msra.mxu0 0.0
    %313 = vmatprep.subr.mxu0 0.0
    %314 = vmatpush1.msra.mxu0 0.0
    %315 = vmatprep.subr.mxu0 0.0
    %316 = vmatpush1.msra.mxu0 0.0
    %317 = vmatprep.subr.mxu0 0.0
    %318 = vmatpush1.msra.mxu0 0.0
    %319 = vmatprep.subr.mxu0 0.0
    %320 = vmatpush1.msra.mxu0 0.0
    %321 = vmatprep.subr.mxu0 0.0
    %322 = vmatpush1.msra.mxu0 0.0
    %323 = vmatprep.subr.mxu0 0.0
    %324 = vmatpush1.msra.mxu0 0.0
    %325 = vmatprep.subr.mxu0 0.0
    %326 = vmatpush1.msra.mxu0 0.0
    %327 = vmatprep.subr.mxu0 0.0
    %328 = vmatpush1.msra.mxu0 0.0
    %329 = vmatprep.subr.mxu0 0.0
    %330 = vmatpush1.msra.mxu0 0.0
    %331 = vmatprep.subr.mxu0 0.0
    %332 = vmatpush1.msra.mxu0 0.0
    %333 = vmatprep.subr.mxu0 0.0
    %334 = vmatpush1.msra.mxu0 0.0
    %335 = vmatprep.subr.mxu0 0.0
    %336 = vmatpush1.msra.mxu0 0.0
    %337 = vmatprep.subr.mxu0 0.0
    %338 = vmatpush1.msra.mxu0 0.0
    %339 = vmatprep.subr.mxu0 0.0
    %340 = vmatpush1.msra.mxu0 0.0
    %341 = vmatprep.subr.mxu0 0.0
    %342 = vmatpush1.msra.mxu0 0.0
    %343 = vmatprep.subr.mxu0 0.0
    %344 = vmatpush1.msra.mxu0 0.0
    %345 = vmatprep.mubr.f32.mxu0 0.0
    %346 = vmatmul.mubr.f32.gmra.mrb[0].mxu0 %v270
    %v347 = vpop.f32.mrb[0].mxu0
    %v348 = vadd.f32 %v252, %v347
    %v349 = vpop.f32.mrb[0].mxu0
    %v350 = vadd.f32 %v252, %v349
    %351 = vmatprep.mubr.f32.mxu0 0.0
    %352 = vmatmul.mubr.f32.gmra.mrb[0].mxu0 %v273
    %v353 = vpop.f32.mrb[0].mxu0
    %v354 = vadd.f32 %v257, %v353
    %v355 = vpop.f32.mrb[0].mxu0
    %v356 = vadd.f32 %v257, %v355
    %357 = vmatprep.mubr.f32.mxu0 0.0
    %358 = vmatmul.mubr.f32.gmra.mrb[0].mxu0 %v276
    %v359 = vpop.f32.mrb[0].mxu0
    %v360 = vadd.f32 %v262, %v359
    %v361 = vpop.f32.mrb[0].mxu0
    %v362 = vadd.f32 %v262, %v361
    %363 = vmatprep.mubr.f32.mxu0 0.0
    %364 = vmatmul.mubr.f32.gmra.mrb[0].mxu0 %v279
    %v365 = vpop.f32.mrb[0].mxu0
    %v366 = vadd.f32 %v267, %v365
    %v367 = vpop.f32.mrb[0].mxu0
    %v368 = vadd.f32 %v267, %v367
    %369 = vdwg.mxu0
    %v370 = vand.u32 2147483647, %v348
    %v371 = vand.u32 2147483647, %v350
    %v372 = vand.u32 2147483647, %v354
    %v373 = vand.u32 2147483647, %v356
    %v374 = vand.u32 2147483647, %v360
    %v375 = vand.u32 2147483647, %v362
    %v376 = vand.u32 2147483647, %v366
    %v377 = vand.u32 2147483647, %v368
    %v379 = vlaneseq
    %v380 = vshrl.u32 %v379, 7
    %v381 = vsub.s32 0, %v380
    %v382 = vrot.slane %v20, %v381
    %v383 = vlaneseq
    %v384 = vshrl.u32 %v383, 7
    %v385 = vsub.s32 1, %v384
    %v386 = vrot.slane %v20, %v385
    %v389 = vmul.f32 %v374, %v382
    %v390 = vmul.f32 %v375, %v386
    %v393 = vrot.slane %v389, 1
    %v394 = vrot.slane %v390, 1
    %v397 = vsub.f32 %v374, %v393
    %v398 = vsub.f32 %v375, %v394
    %v400 = vlaneseq
    %v401 = vshrl.u32 %v400, 7
    %v402 = vsub.s32 0, %v401
    %v403 = vrot.slane %v30, %v402
    %v404 = vlaneseq
    %v405 = vshrl.u32 %v404, 7
    %v406 = vsub.s32 1, %v405
    %v407 = vrot.slane %v30, %v406
    %v410 = vmul.f32 %v374, %v403
    %v411 = vmul.f32 %v375, %v407
    %v414 = vrot.slane %v410, 2
    %v415 = vrot.slane %v411, 2
    %v418 = vsub.f32 %v397, %v414
    %v419 = vsub.f32 %v398, %v415
    %v420 = vadd.f32 %v32, %v34
    %v421 = vrcp.pop 2.0
    %v422 = vmul.f32 %v372, %v421
    %v423 = vmul.f32 %v373, %v421
    %v426 = vrot.slane %v422, 7
    %v427 = vrot.slane %v423, 7
    %v430 = vsub.f32 %v372, %v426
    %v431 = vsub.f32 %v373, %v427
    %v434 = vrot.slane %v372, 2
    %v435 = vrot.slane %v373, 2
    %v438 = vmul.f32 %v372, %v434
    %v439 = vmul.f32 %v373, %v435
    %v442 = vcombine.high %v438, %v439
    %v444 = vunpack.c.l.s4 1966171168
    %v445 = vunpack.c.0.s8 %v444
    %v446 = vlaneseq
    %v447 = vshrl.u32 %v446, 7
    %v448 = vsub.s32 %v445, %v447
    %v449 = vrot.slane %v442, %v448
    %v450 = vcombine.high %v449, %v449
    %v452 = vunpack.c.l.s4 1966171168
    %v453 = vunpack.c.0.s8 %v452
    %v454 = vlaneseq
    %v455 = vshrl.u32 %v454, 7
    %v456 = vsub.s32 %v453, %v455
    %v457 = vrot.slane %v450, %v456
    %v459 = vsub.f32 %v420, %v457
    %v461 = vlaneseq
    %v462 = vshrl.u32 %v461, 7
    %v463 = vsub.s32 0, %v462
    %v464 = vrot.slane %v459, %v463
    %v465 = vlaneseq
    %v466 = vshrl.u32 %v465, 7
    %v467 = vsub.s32 1, %v466
    %v468 = vrot.slane %v459, %v467
    %v471 = vmul.f32 %v372, %v464
    %v472 = vmul.f32 %v373, %v468
    %v473 = vtanh.pop %v471
    %v474 = vtanh.pop %v472
    %v475 = vrot.slane %v372, 1
    %v476 = vrot.slane %v373, 1
    %v479 = vmul.f32 %v372, %v475
    %v480 = vmul.f32 %v373, %v476
    %v483 = vcombine.high %v479, %v480
    %v485 = vunpack.c.l.s4 1966171168
    %v486 = vunpack.c.0.s8 %v485
    %v487 = vlaneseq
    %v488 = vshrl.u32 %v487, 7
    %v489 = vsub.s32 %v486, %v488
    %v490 = vrot.slane %v483, %v489
    %v492 = vunpack.c.l.s4 1966171168
    %v493 = vunpack.c.0.s8 %v492
    %v494 = vlaneseq
    %v495 = vshrl.u32 %v494, 7
    %v496 = vsub.s32 %v493, %v495
    %v497 = vrot.slane %v490, %v496
    %v498 = vcombine.high %v497, %v497
    %v500 = vsub.f32 %v420, %v498
    %v502 = vlaneseq
    %v503 = vshrl.u32 %v502, 7
    %v504 = vsub.s32 0, %v503
    %v505 = vrot.slane %v500, %v504
    %v506 = vlaneseq
    %v507 = vshrl.u32 %v506, 7
    %v508 = vsub.s32 1, %v507
    %v509 = vrot.slane %v500, %v508
    %v512 = vmul.f32 %v372, %v505
    %v513 = vmul.f32 %v373, %v509
    %v514 = vtanh.pop %v512
    %v515 = vtanh.pop %v513
    %v518 = vrot.slane %v514, 1
    %v519 = vrot.slane %v515, 1
    %v522 = vsub.f32 %v473, %v518
    %v523 = vsub.f32 %v474, %v519
    %v524 = vadd.f32 %v522, 2.0
    %v525 = vadd.f32 %v523, 2.0
    %v528 = vrot.slane %v524, 2
    %v529 = vrot.slane %v525, 2
    %v532 = vmul.f32 %v430, %v528
    %v533 = vmul.f32 %v431, %v529
    %v536 = vrot.slane %v532, 1
    %v537 = vrot.slane %v533, 1
    %v540 = vadd.f32 %v372, %v536
    %v541 = vadd.f32 %v373, %v537
    %v542 = vmul.f32 %v374, %v475
    %v543 = vmul.f32 %v375, %v476
    %v545 = vlaneseq
    %v546 = vshrl.u32 %v545, 7
    %v547 = vsub.s32 0, %v546
    %v548 = vrot.slane %v36, %v547
    %v549 = vlaneseq
    %v550 = vshrl.u32 %v549, 7
    %v551 = vsub.s32 1, %v550
    %v552 = vrot.slane %v36, %v551
    %v555 = vmul.f32 %v542, %v548
    %v556 = vmul.f32 %v543, %v552
    %v557 = vrcp.pop %v374
    %v558 = vrcp.pop %v375
    %v559 = vmul.f32 %v374, %v557
    %v560 = vmul.f32 %v375, %v558
    %v561 = vsub.f32 2.0, %v559
    %v562 = vsub.f32 2.0, %v560
    %v563 = vmul.f32 %v557, %v561
    %v564 = vmul.f32 %v558, %v562
    %v567 = vrot.slane %v563, 7
    %v568 = vrot.slane %v564, 7
    %v571 = vmul.f32 %v555, %v567
    %v572 = vmul.f32 %v556, %v568
    %v574 = vlaneseq
    %v575 = vshrl.u32 %v574, 7
    %v576 = vsub.s32 0, %v575
    %v577 = vrot.slane %v28, %v576
    %v578 = vlaneseq
    %v579 = vshrl.u32 %v578, 7
    %v580 = vsub.s32 1, %v579
    %v581 = vrot.slane %v28, %v580
    %v584 = vmul.f32 %v376, %v577
    %v585 = vmul.f32 %v377, %v581
    %v588 = vrot.slane %v376, 2
    %v589 = vrot.slane %v377, 2
    %v592 = vmul.f32 %v584, %v588
    %v593 = vmul.f32 %v585, %v589
    %v596 = vrot.slane %v592, 1
    %v597 = vrot.slane %v593, 1
    %v600 = vadd.f32 %v374, %v596
    %v601 = vadd.f32 %v375, %v597
    %v603 = vlaneseq
    %v604 = vshrl.u32 %v603, 7
    %v605 = vsub.s32 0, %v604
    %v606 = vrot.slane %v22, %v605
    %v607 = vlaneseq
    %v608 = vshrl.u32 %v607, 7
    %v609 = vsub.s32 1, %v608
    %v610 = vrot.slane %v22, %v609
    %v613 = vmul.f32 %v600, %v606
    %v614 = vmul.f32 %v601, %v610
    %v615 = vand.u32 2147483647, %v22
    %v617 = vlaneseq
    %v618 = vshrl.u32 %v617, 7
    %v619 = vsub.s32 0, %v618
    %v620 = vrot.slane %v615, %v619
    %v621 = vlaneseq
    %v622 = vshrl.u32 %v621, 7
    %v623 = vsub.s32 1, %v622
    %v624 = vrot.slane %v615, %v623
    %v627 = vadd.f32 %v376, %v620
    %v628 = vadd.f32 %v377, %v624
    %v629 = vrcp.pop %v627
    %v630 = vrcp.pop %v628
    %v631 = vmul.f32 %v627, %v629
    %v632 = vmul.f32 %v628, %v630
    %v633 = vsub.f32 2.0, %v631
    %v634 = vsub.f32 2.0, %v632
    %v635 = vmul.f32 %v629, %v633
    %v636 = vmul.f32 %v630, %v634
    %v639 = vrot.slane %v635, 2
    %v640 = vrot.slane %v636, 2
    %v643 = vmul.f32 %v613, %v639
    %v644 = vmul.f32 %v614, %v640
    %v645 = vsub.f32 0.0, %v370
    %v646 = vsub.f32 0.0, %v371
    %v648 = vlaneseq
    %v649 = vshrl.u32 %v648, 7
    %v650 = vsub.s32 0, %v649
    %v651 = vrot.slane %v32, %v650
    %v652 = vlaneseq
    %v653 = vshrl.u32 %v652, 7
    %v654 = vsub.s32 1, %v653
    %v655 = vrot.slane %v32, %v654
    %v658 = vmul.f32 %v645, %v651
    %v659 = vmul.f32 %v646, %v655
    %v661 = vlaneseq
    %v662 = vshrl.u32 %v661, 7
    %v663 = vsub.s32 0, %v662
    %v664 = vrot.slane %v38, %v663
    %v665 = vlaneseq
    %v666 = vshrl.u32 %v665, 7
    %v667 = vsub.s32 1, %v666
    %v668 = vrot.slane %v38, %v667
    %v671 = vmul.f32 %v372, %v664
    %v672 = vmul.f32 %v373, %v668
    %v675 = vrot.slane %v671, 1
    %v676 = vrot.slane %v672, 1
    %v679 = vadd.f32 %v658, %v675
    %v680 = vadd.f32 %v659, %v676
    %v681 = vsub.f32 0.0, %v540
    %v682 = vsub.f32 0.0, %v541
    %v684 = vlaneseq
    %v685 = vshrl.u32 %v684, 7
    %v686 = vsub.s32 0, %v685
    %v687 = vrot.slane %v34, %v686
    %v688 = vlaneseq
    %v689 = vshrl.u32 %v688, 7
    %v690 = vsub.s32 1, %v689
    %v691 = vrot.slane %v34, %v690
    %v694 = vmul.f32 %v681, %v687
    %v695 = vmul.f32 %v682, %v691
    %v696 = vmul.f32 %v370, %v651
    %v697 = vmul.f32 %v371, %v655
    %v700 = vrot.slane %v696, 6
    %v701 = vrot.slane %v697, 6
    %v704 = vadd.f32 %v694, %v700
    %v705 = vadd.f32 %v695, %v701
    %v706 = vsub.f32 0.0, %v372
    %v707 = vsub.f32 0.0, %v373
    %v708 = vmul.f32 %v706, %v548
    %v709 = vmul.f32 %v707, %v552
    %v710 = vmul.f32 %v540, %v687
    %v711 = vmul.f32 %v541, %v691
    %v714 = vrot.slane %v710, 6
    %v715 = vrot.slane %v711, 6
    %v718 = vadd.f32 %v708, %v714
    %v719 = vadd.f32 %v709, %v715
    %v722 = vrot.slane %v370, 2
    %v723 = vrot.slane %v371, 2
    %v726 = vadd.f32 %v370, %v722
    %v727 = vadd.f32 %v371, %v723
    %v728 = vsub.f32 0.0, %v726
    %v729 = vsub.f32 0.0, %v727
    %v731 = vlaneseq
    %v732 = vshrl.u32 %v731, 7
    %v733 = vsub.s32 0, %v732
    %v734 = vrot.slane %v24, %v733
    %v735 = vlaneseq
    %v736 = vshrl.u32 %v735, 7
    %v737 = vsub.s32 1, %v736
    %v738 = vrot.slane %v24, %v737
    %v741 = vmul.f32 %v728, %v734
    %v742 = vmul.f32 %v729, %v738
    %v744 = vlaneseq
    %v745 = vshrl.u32 %v744, 7
    %v746 = vsub.s32 0, %v745
    %v747 = vrot.slane %v26, %v746
    %v748 = vlaneseq
    %v749 = vshrl.u32 %v748, 7
    %v750 = vsub.s32 1, %v749
    %v751 = vrot.slane %v26, %v750
    %v754 = vmul.f32 %v370, %v747
    %v755 = vmul.f32 %v371, %v751
    %v758 = vrot.slane %v754, 7
    %v759 = vrot.slane %v755, 7
    %v762 = vadd.f32 %v741, %v758
    %v763 = vadd.f32 %v742, %v759
    %v765 = vlaneseq
    %v766 = vshrl.u32 %v765, 7
    %v767 = vsub.s32 0, %v766
    %v768 = vrot.slane %v18, %v767
    %v769 = vlaneseq
    %v770 = vshrl.u32 %v769, 7
    %v771 = vsub.s32 1, %v770
    %v772 = vrot.slane %v18, %v771
    %v775 = vadd.f32 %v762, %v768
    %v776 = vadd.f32 %v763, %v772
    %v777 = vmul.f32 %v728, %v747
    %v778 = vmul.f32 %v729, %v751
    %v779 = vmul.f32 %v370, %v734
    %v780 = vmul.f32 %v371, %v738
    %v783 = vrot.slane %v779, 1
    %v784 = vrot.slane %v780, 1
    %v787 = vadd.f32 %v777, %v783
    %v788 = vadd.f32 %v778, %v784
    %v789 = vsub.f32 0.0, %v374
    %v790 = vsub.f32 0.0, %v375
    %v791 = vsub.f32 %v30, %v24
    %v793 = vlaneseq
    %v794 = vshrl.u32 %v793, 7
    %v795 = vsub.s32 0, %v794
    %v796 = vrot.slane %v791, %v795
    %v797 = vlaneseq
    %v798 = vshrl.u32 %v797, 7
    %v799 = vsub.s32 1, %v798
    %v800 = vrot.slane %v791, %v799
    %v803 = vmul.f32 %v789, %v796
    %v804 = vmul.f32 %v790, %v800
    %v805 = vsub.f32 0.0, %v376
    %v806 = vsub.f32 0.0, %v377
    %v807 = vmul.f32 %v805, %v577
    %v808 = vmul.f32 %v806, %v581
    %v809 = vmul.f32 %v376, %v734
    %v810 = vmul.f32 %v377, %v738
    %v811 = vadd.f32 %v807, %v809
    %v812 = vadd.f32 %v808, %v810
    %v815 = vrot.slane %v571, 7
    %v816 = vrot.slane %v572, 7
    %v819 = vadd.f32 %v418, %v815
    %v820 = vadd.f32 %v419, %v816
    %v823 = vrot.slane %v374, 4
    %v824 = vrot.slane %v375, 4
    %v827 = vsub.f32 %v819, %v823
    %v828 = vsub.f32 %v820, %v824
    %v829 = vmul.f32 %v370, %v382
    %v830 = vmul.f32 %v371, %v386
    %v833 = vrot.slane %v829, 6
    %v834 = vrot.slane %v830, 6
    %v837 = vsub.f32 %v827, %v833
    %v838 = vsub.f32 %v828, %v834
    %v839 = vmul.f32 %v370, %v606
    %v840 = vmul.f32 %v371, %v610
    %v843 = vrot.slane %v839, 7
    %v844 = vrot.slane %v840, 7
    %v847 = vadd.f32 %v837, %v843
    %v848 = vadd.f32 %v838, %v844
    %v849 = vsub.f32 0.0, %v643
    %v850 = vsub.f32 0.0, %v644
    %v851 = vrot.slane %v829, 1
    %v852 = vrot.slane %v830, 1
    %v855 = vadd.f32 %v849, %v851
    %v856 = vadd.f32 %v850, %v852
    %v857 = vrot.slane %v839, 2
    %v858 = vrot.slane %v840, 2
    %v861 = vsub.f32 %v855, %v857
    %v862 = vsub.f32 %v856, %v858
    %863 = vst [vmem:[#allocation2] sm:$0x1f] %v143
    %864 = vst [vmem:[#allocation2 + $0x8] sm:$0x1f] %v145
    %v867 = vcombine.low %v847, %v848
    %v869 = vunpack.c.l.s4 1966171168
    %v870 = vunpack.c.0.s8 %v869
    %v871 = vlaneseq
    %v872 = vshrl.u32 %v871, 7
    %v873 = vsub.s32 %v870, %v872
    %v874 = vrot.slane %v867, %v873
    %v876 = vunpack.c.l.s4 1966171168
    %v877 = vunpack.c.0.s8 %v876
    %v878 = vlaneseq
    %v879 = vshrl.u32 %v878, 7
    %v880 = vsub.s32 %v877, %v879
    %v881 = vrot.slane %v874, %v880
    %v882 = vcombine.high %v881, %v881
    %v884 = vadd.f32 %v20, %v882
    %v885 = vlaneseq
    %vm886 = vcmp.ge.s32.totalorder %v885, 0
    %vm887 = vcmp.lt.s32.totalorder %v885, 256
    %vm888 = vmand %vm886, %vm887
    %889 = vst.msk [vmem:[#allocation4] ss:$8 sm:$0x3] %vm888, %v884
    %890 = vst.msk [vmem:[#allocation4] ss:$8 sm:$0x0] %vm888, %v884
    %v893 = vcombine.high %v861, %v862
    %v895 = vunpack.c.l.s4 1966171168
    %v896 = vunpack.c.0.s8 %v895
    %v897 = vlaneseq
    %v898 = vshrl.u32 %v897, 7
    %v899 = vsub.s32 %v896, %v898
    %v900 = vrot.slane %v893, %v899
    %v901 = vcombine.high %v900, %v900
    %v903 = vunpack.c.l.s4 1966171168
    %v904 = vunpack.c.0.s8 %v903
    %v905 = vlaneseq
    %v906 = vshrl.u32 %v905, 7
    %v907 = vsub.s32 %v904, %v906
    %v908 = vrot.slane %v901, %v907
    %v909 = vcombine.high %v908, %v908
    %v911 = vadd.f32 %v22, %v909
    %s912 = scalar_lea.vmem [#allocation4], 1
    %913 = vst.msk [vmem:[%s912] ss:$8 sm:$0x3] %vm888, %v911
    %914 = vst.msk [vmem:[%s912] ss:$8 sm:$0x0] %vm888, %v911
    %v917 = vcombine.low %v775, %v776
    %v919 = vunpack.c.l.s4 1966171168
    %v920 = vunpack.c.0.s8 %v919
    %v921 = vlaneseq
    %v922 = vshrl.u32 %v921, 7
    %v923 = vsub.s32 %v920, %v922
    %v924 = vrot.slane %v917, %v923
    %v925 = vcombine.high %v924, %v924
    %v927 = vunpack.c.l.s4 1966171168
    %v928 = vunpack.c.0.s8 %v927
    %v929 = vlaneseq
    %v930 = vshrl.u32 %v929, 7
    %v931 = vsub.s32 %v928, %v930
    %v932 = vrot.slane %v925, %v931
    %v933 = vcombine.high %v932, %v932
    %v935 = vadd.f32 %v24, %v933
    %s936 = scalar_lea.vmem [#allocation4], 2
    %937 = vst.msk [vmem:[%s936] ss:$8 sm:$0x3] %vm888, %v935
    %938 = vst.msk [vmem:[%s936] ss:$8 sm:$0x0] %vm888, %v935
    %v941 = vcombine.low %v787, %v788
    %v943 = vunpack.c.l.s4 1966171168
    %v944 = vunpack.c.0.s8 %v943
    %v945 = vlaneseq
    %v946 = vshrl.u32 %v945, 7
    %v947 = vsub.s32 %v944, %v946
    %v948 = vrot.slane %v941, %v947
    %v950 = vunpack.c.l.s4 1966171168
    %v951 = vunpack.c.0.s8 %v950
    %v952 = vlaneseq
    %v953 = vshrl.u32 %v952, 7
    %v954 = vsub.s32 %v951, %v953
    %v955 = vrot.slane %v948, %v954
    %v956 = vcombine.high %v955, %v955
    %v958 = vadd.f32 %v26, %v956
    %s959 = scalar_lea.vmem [#allocation4], 3
    %960 = vst.msk [vmem:[%s959] ss:$8 sm:$0x3] %vm888, %v958
    %961 = vst.msk [vmem:[%s959] ss:$8 sm:$0x0] %vm888, %v958
    %v964 = vcombine.low %v811, %v812
    %v966 = vunpack.c.l.s4 1966171168
    %v967 = vunpack.c.0.s8 %v966
    %v968 = vlaneseq
    %v969 = vshrl.u32 %v968, 7
    %v970 = vsub.s32 %v967, %v969
    %v971 = vrot.slane %v964, %v970
    %v972 = vcombine.high %v971, %v971
    %v974 = vunpack.c.l.s4 1966171168
    %v975 = vunpack.c.0.s8 %v974
    %v976 = vlaneseq
    %v977 = vshrl.u32 %v976, 7
    %v978 = vsub.s32 %v975, %v977
    %v979 = vrot.slane %v972, %v978
    %v980 = vcombine.high %v979, %v979
    %v982 = vadd.f32 %v28, %v980
    %s983 = scalar_lea.vmem [#allocation4], 4
    %984 = vst.msk [vmem:[%s983] ss:$8 sm:$0x3] %vm888, %v982
    %985 = vst.msk [vmem:[%s983] ss:$8 sm:$0x0] %vm888, %v982
    %v988 = vcombine.high %v803, %v804
    %v990 = vunpack.c.l.s4 1966171168
    %v991 = vunpack.c.0.s8 %v990
    %v992 = vlaneseq
    %v993 = vshrl.u32 %v992, 7
    %v994 = vsub.s32 %v991, %v993
    %v995 = vrot.slane %v988, %v994
    %v996 = vcombine.high %v995, %v995
    %v998 = vunpack.c.l.s4 1966171168
    %v999 = vunpack.c.0.s8 %v998
    %v1000 = vlaneseq
    %v1001 = vshrl.u32 %v1000, 7
    %v1002 = vsub.s32 %v999, %v1001
    %v1003 = vrot.slane %v996, %v1002
    %v1005 = vadd.f32 %v30, %v1003
    %s1006 = scalar_lea.vmem [#allocation4], 5
    %1007 = vst.msk [vmem:[%s1006] ss:$8 sm:$0x3] %vm888, %v1005
    %1008 = vst.msk [vmem:[%s1006] ss:$8 sm:$0x0] %vm888, %v1005
    %v1011 = vcombine.high %v679, %v680
    %v1013 = vunpack.c.l.s4 1966171168
    %v1014 = vunpack.c.0.s8 %v1013
    %v1015 = vlaneseq
    %v1016 = vshrl.u32 %v1015, 7
    %v1017 = vsub.s32 %v1014, %v1016
    %v1018 = vrot.slane %v1011, %v1017
    %v1020 = vunpack.c.l.s4 1966171168
    %v1021 = vunpack.c.0.s8 %v1020
    %v1022 = vlaneseq
    %v1023 = vshrl.u32 %v1022, 7
    %v1024 = vsub.s32 %v1021, %v1023
    %v1025 = vrot.slane %v1018, %v1024
    %v1026 = vcombine.high %v1025, %v1025
    %v1028 = vadd.f32 %v32, %v1026
    %s1029 = scalar_lea.vmem [#allocation4], 6
    %1030 = vst.msk [vmem:[%s1029] ss:$8 sm:$0x3] %vm888, %v1028
    %1031 = vst.msk [vmem:[%s1029] ss:$8 sm:$0x0] %vm888, %v1028
    %v1034 = vcombine.low %v704, %v705
    %v1036 = vunpack.c.l.s4 1966171168
    %v1037 = vunpack.c.0.s8 %v1036
    %v1038 = vlaneseq
    %v1039 = vshrl.u32 %v1038, 7
    %v1040 = vsub.s32 %v1037, %v1039
    %v1041 = vrot.slane %v1034, %v1040
    %v1043 = vunpack.c.l.s4 1966171168
    %v1044 = vunpack.c.0.s8 %v1043
    %v1045 = vlaneseq
    %v1046 = vshrl.u32 %v1045, 7
    %v1047 = vsub.s32 %v1044, %v1046
    %v1048 = vrot.slane %v1041, %v1047
    %v1050 = vadd.f32 %v34, %v1048
    %s1051 = scalar_lea.vmem [#allocation4], 7
    %1052 = vst.msk [vmem:[%s1051] ss:$8 sm:$0x3] %vm888, %v1050
    %1053 = vst.msk [vmem:[%s1051] ss:$8 sm:$0x0] %vm888, %v1050
    %v1056 = vcombine.low %v718, %v719
    %v1058 = vunpack.c.l.s4 1966171168
    %v1059 = vunpack.c.0.s8 %v1058
    %v1060 = vlaneseq
    %v1061 = vshrl.u32 %v1060, 7
    %v1062 = vsub.s32 %v1059, %v1061
    %v1063 = vrot.slane %v1056, %v1062
    %v1065 = vunpack.c.l.s4 1966171168
    %v1066 = vunpack.c.0.s8 %v1065
    %v1067 = vlaneseq
    %v1068 = vshrl.u32 %v1067, 7
    %v1069 = vsub.s32 %v1066, %v1068
    %v1070 = vrot.slane %v1063, %v1069
    %v1071 = vcombine.high %v1070, %v1070
    %v1073 = vadd.f32 %v36, %v1071
    %s1074 = scalar_lea.vmem [#allocation4], 16
    %1075 = vst.msk [vmem:[%s1074] ss:$8 sm:$0x3] %vm888, %v1073
    %1076 = vst.msk [vmem:[%s1074] ss:$8 sm:$0x0] %vm888, %v1073
    // Predicated region
    $region10: #{tpu_custom_call.1} parent=1 // pred_check
      _
    $region11: #{tpu_custom_call.1} parent=1 // pred_check_branch
      %1078 = sbr.rel (0) target = $region13
    $region12: #{tpu_custom_call.1} parent=1 // pred_region
      %s1080 = ssub.s32 256, 256
      %1081 = vsyncadd [#allocation3], %s1080
      %s1083 = sshll.u32 [#allocation2], 4
      %s1084 = int_to_ptr.vmem [resolvable:$true] %s1083
      %1086 = dma.vmem_to_hbm [thread:$0]  %s1084, 256, %s2, [#allocation3]
    $region13: #{tpu_custom_call.1} parent=1 // pred_fallthru
      _
    // Predicated region
    $region14: #{tpu_custom_call.1} parent=1 // pred_check
      _
    $region15: #{tpu_custom_call.1} parent=1 // pred_check_branch
      %1088 = sbr.rel (0) target = $region17
    $region16: #{tpu_custom_call.1} parent=1 // pred_region
      %s1090 = ssub.s32 512, 512
      %1091 = vsyncadd [#allocation5], %s1090
      %s1092 = sshll.u32 [#allocation4], 4
      %s1093 = int_to_ptr.vmem [resolvable:$true] %s1092
      %1098 = dma.vmem_to_hbm [thread:$0]  %s1093, 512, %s3, [#allocation5], 256, 256, 16
    $region17: #{tpu_custom_call.1} parent=1 // pred_fallthru
      _
    // Predicated region
    $region18: #{tpu_custom_call.1} parent=1 // pred_check
      _
    $region19: #{tpu_custom_call.1} parent=1 // pred_check_branch
      %1100 = sbr.rel (0) target = $region21
    $region20: #{tpu_custom_call.1} parent=1 // pred_region
      %1101 = dma.done [#allocation3], 256
    $region21: #{tpu_custom_call.1} parent=1 // pred_fallthru
      _
    // Predicated region
    $region22: #{tpu_custom_call.1} parent=1 // pred_check
      _
    $region23: #{tpu_custom_call.1} parent=1 // pred_check_branch
      %1103 = sbr.rel (0) target = $region25
    $region24: #{tpu_custom_call.1} parent=1 // pred_region
      %1104 = dma.done [#allocation5], 512
    $region25: #{tpu_custom_call.1} parent=1 // pred_fallthru
      _
    %1105 = vsyncpa [#allocation3], 1
    %1106 = vsyncpa [#allocation5], 1

</llo_original>
